<compile_context>
chip_gen: v7x
topology: tpu7x:2x2x1
jax: 0.10.0
libtpu: 0.0.40
codegen_flags: <defaults>
</compile_context>

<pallas_src>
import functools

import jax
import jax.numpy as jnp
from jax.experimental import pallas as pl
from jax.experimental.pallas import tpu as pltpu

_PD_EPS = 1e-6   # F.pairwise_distance default eps (added to the difference)
_EPS = 1e-9      # ContrastiveLoss.eps (added before the second sqrt)


def _contrastive_loss_kernel(o1_ref, o2_ref, label_ref, loss_ref, *, margin):
    """Per-row contrastive loss for one (TB, D) batch tile.

    o1_ref, o2_ref : (TB, D) embedding tiles
    label_ref      : (TB, 1) float labels (1 = similar pair, 0 = dissimilar)
    loss_ref       : (TB, 1) per-row loss output
    """
    o1 = o1_ref[...].astype(jnp.float32)
    o2 = o2_ref[...].astype(jnp.float32)
    lab = label_ref[...].astype(jnp.float32)

    # F.pairwise_distance: ||x1 - x2 + eps||_2 reduced over the feature (lane) axis.
    diff = o1 - o2 + _PD_EPS
    dist = jnp.sqrt(jnp.sum(diff * diff, axis=-1, keepdims=True))      # (TB, 1)

    hinge = jnp.maximum(margin - jnp.sqrt(dist + _EPS), 0.0)           # relu(margin - sqrt(d+eps))
    loss_ref[...] = 0.5 * (lab * dist + (1.0 - lab) * hinge * hinge)


def _choose_block_rows(B, D, dtype_bytes, vmem_budget=16 * 1024 * 1024):
    """Largest multiple-of-8 row tile whose double-buffered footprint fits a
    v5e-safe 16 MiB scoped-VMEM budget; capped at 512 rows (near HBM roofline)."""
    if B <= 8:
        return B                                        # single full-array block
    per_row = (2 * D + 2) * max(dtype_bytes, 4) * 2     # 2 emb tiles + label/out cols, x2 buffers
    tb = min(512, max(8, vmem_budget // per_row))
    tb = (tb // 8) * 8
    tb = min(tb, (B // 8) * 8)
    return max(8, tb)


def contrastive_loss(output1, output2, label, margin=2.0, block_rows=None):
    """Pallas equivalent of ContrastiveLoss(margin).forward(output1, output2, label)."""
    assert output1.shape == output2.shape and output1.ndim == 2
    B, D = output1.shape
    label_col = jnp.reshape(label, (B, 1)).astype(jnp.float32)

    tb = block_rows if block_rows is not None else _choose_block_rows(
        B, D, jnp.dtype(output1.dtype).itemsize)
    grid = (pl.cdiv(B, tb),)

    losses = pl.pallas_call(
        functools.partial(_contrastive_loss_kernel, margin=float(margin)),
        out_shape=jax.ShapeDtypeStruct((B, 1), jnp.float32),
        grid=grid,
        in_specs=[
            pl.BlockSpec((tb, D), lambda i: (i, 0)),
            pl.BlockSpec((tb, D), lambda i: (i, 0)),
            pl.BlockSpec((tb, 1), lambda i: (i, 0)),
        ],
        out_specs=pl.BlockSpec((tb, 1), lambda i: (i, 0)),
        compiler_params=pltpu.CompilerParams(
            dimension_semantics=("parallel",),           # no cross-tile carry
            vmem_limit_bytes=32 * 1024 * 1024,
        ),
    )(output1, output2, label_col)

    return jnp.mean(losses)                              # mean over the B rows


def _reference(output1, output2, label, margin=2.0):
    """Pure-JAX reference of the PyTorch forward()."""
    o1 = output1.astype(jnp.float32)
    o2 = output2.astype(jnp.float32)
    lab = label.astype(jnp.float32)
    diff = o1 - o2 + _PD_EPS
    dist = jnp.sqrt(jnp.sum(diff * diff, axis=1))
    hinge = jnp.maximum(margin - jnp.sqrt(dist + _EPS), 0.0)
    losses = 0.5 * (lab * dist + (1.0 - lab) * hinge ** 2)
    return jnp.mean(losses)


if __name__ == "__main__":
    key = jax.random.PRNGKey(0)
    k1, k2, k3, k4, k5 = jax.random.split(key, 5)

    # 1) aligned batch, single tile
    B, D = 16, 64
    o1 = jax.random.normal(k1, (B, D), dtype=jnp.float32)
    o2 = jax.random.normal(k2, (B, D), dtype=jnp.float32)
    lab = jax.random.bernoulli(k3, 0.5, (B,)).astype(jnp.float32)

    out = jax.block_until_ready(contrastive_loss(o1, o2, lab, margin=2.0))
    ref = _reference(o1, o2, lab, margin=2.0)
    assert jnp.allclose(out, ref, rtol=1e-5, atol=1e-5), (out, ref)

    # 2) ragged batch (B % block_rows != 0): exercises the masked last tile
    Br = 12
    out_r = jax.block_until_ready(
        contrastive_loss(o1[:Br], o2[:Br], lab[:Br], margin=2.0, block_rows=8))
    ref_r = _reference(o1[:Br], o2[:Br], lab[:Br], margin=2.0)
    assert jnp.allclose(out_r, ref_r, rtol=1e-5, atol=1e-5), (out_r, ref_r)

    # 3) bf16 embeddings (halved HBM traffic; in-kernel f32 accumulation)
    o1b = jax.random.normal(k4, (B, 128), dtype=jnp.bfloat16)
    o2b = jax.random.normal(k5, (B, 128), dtype=jnp.bfloat16)
    out_b = jax.block_until_ready(contrastive_loss(o1b, o2b, lab, margin=2.0))
    ref_b = _reference(o1b, o2b, lab, margin=2.0)
    assert jnp.allclose(out_b, ref_b, rtol=1e-4, atol=1e-4), (out_b, ref_b)

    print("KERNEL_OK")
</pallas_src>

<mosaic_0001>
module attributes {stable_mosaic.version = 11 : i64} {
  func.func @_contrastive_loss_kernel(%arg0: i32, %arg1: memref<16x64xf32, #tpu.memory_space<vmem>>, %arg2: memref<16x64xf32, #tpu.memory_space<vmem>>, %arg3: memref<16x1xf32, #tpu.memory_space<vmem>>, %arg4: memref<16x1xf32, #tpu.memory_space<vmem>>) attributes {dimension_semantics = [#tpu.dimension_semantics<parallel>], iteration_bounds = array<i64: 1>, scalar_prefetch = 0 : i64, scratch_operands = 0 : i64, tpu.core_type = #tpu.core_type<tc>, window_params = [{transform_indices = @transform_0, window_bounds = array<i64: 16, 64>}, {transform_indices = @transform_1, window_bounds = array<i64: 16, 64>}, {transform_indices = @transform_2, window_bounds = array<i64: 16, 1>}, {transform_indices = @transform_3, window_bounds = array<i64: 16, 1>}]} {
    %c0 = arith.constant 0 : index
    %c0_0 = arith.constant 0 : index
    %0 = vector.load %arg1[%c0, %c0_0] : memref<16x64xf32, #tpu.memory_space<vmem>>, vector<16x64xf32>
    %c0_1 = arith.constant 0 : index
    %c0_2 = arith.constant 0 : index
    %1 = vector.load %arg2[%c0_1, %c0_2] : memref<16x64xf32, #tpu.memory_space<vmem>>, vector<16x64xf32>
    %c0_3 = arith.constant 0 : index
    %c0_4 = arith.constant 0 : index
    %2 = vector.load %arg3[%c0_3, %c0_4] : memref<16x1xf32, #tpu.memory_space<vmem>>, vector<16x1xf32>
    %3 = arith.subf %0, %1 : vector<16x64xf32>
    %cst = arith.constant 9.99999997E-7 : f32
    %4 = vector.broadcast %cst : f32 to vector<16x64xf32>
    %5 = arith.addf %3, %4 : vector<16x64xf32>
    %6 = arith.mulf %5, %5 : vector<16x64xf32>
    %cst_5 = arith.constant dense<0.000000e+00> : vector<16xf32>
    %7 = vector.multi_reduction <add>, %6, %cst_5 [1] : vector<16x64xf32> to vector<16xf32>
    %8 = vector.shape_cast %7 : vector<16xf32> to vector<16x1xf32>
    %9 = math.sqrt %8 : vector<16x1xf32>
    %cst_6 = arith.constant 9.99999971E-10 : f32
    %10 = vector.broadcast %cst_6 : f32 to vector<16x1xf32>
    %11 = arith.addf %9, %10 : vector<16x1xf32>
    %12 = math.sqrt %11 : vector<16x1xf32>
    %cst_7 = arith.constant 2.000000e+00 : f32
    %13 = vector.broadcast %cst_7 : f32 to vector<16x1xf32>
    %14 = arith.subf %13, %12 : vector<16x1xf32>
    %cst_8 = arith.constant 0.000000e+00 : f32
    %15 = vector.broadcast %cst_8 : f32 to vector<16x1xf32>
    %16 = arith.maximumf %14, %15 : vector<16x1xf32>
    %17 = arith.mulf %2, %9 : vector<16x1xf32>
    %cst_9 = arith.constant 1.000000e+00 : f32
    %18 = vector.broadcast %cst_9 : f32 to vector<16x1xf32>
    %19 = arith.subf %18, %2 : vector<16x1xf32>
    %20 = arith.mulf %19, %16 : vector<16x1xf32>
    %21 = arith.mulf %20, %16 : vector<16x1xf32>
    %22 = arith.addf %17, %21 : vector<16x1xf32>
    %cst_10 = arith.constant 5.000000e-01 : f32
    %23 = vector.broadcast %cst_10 : f32 to vector<16x1xf32>
    %24 = arith.mulf %23, %22 : vector<16x1xf32>
    %c0_11 = arith.constant 0 : index
    %c0_12 = arith.constant 0 : index
    %25 = vector.load %arg4[%c0_11, %c0_12] : memref<16x1xf32, #tpu.memory_space<vmem>>, vector<16x1xf32>
    tpu.vector_store %arg4[%c0_11, %c0_12], %24 {strides = array<i32>} : memref<16x1xf32, #tpu.memory_space<vmem>>, vector<16x1xf32>,
    return
  }
  func.func @transform_0(%arg0: i32) -> (i32, i32) {
    %c0_i32 = arith.constant 0 : i32
    %c0_i32_0 = arith.constant 0 : i32
    return %arg0, %c0_i32 : i32, i32
  }
  func.func @transform_1(%arg0: i32) -> (i32, i32) {
    %c0_i32 = arith.constant 0 : i32
    %c0_i32_0 = arith.constant 0 : i32
    return %arg0, %c0_i32 : i32, i32
  }
  func.func @transform_2(%arg0: i32) -> (i32, i32) {
    %c0_i32 = arith.constant 0 : i32
    %c0_i32_0 = arith.constant 0 : i32
    return %arg0, %c0_i32 : i32, i32
  }
  func.func @transform_3(%arg0: i32) -> (i32, i32) {
    %c0_i32 = arith.constant 0 : i32
    %c0_i32_0 = arith.constant 0 : i32
    return %arg0, %c0_i32 : i32, i32
  }
}

</mosaic_0001>

<llo_original>
// kernel: tpu_custom_call.1
$region0: #{tpu_custom_call.1}
  #allocation0 [shape = 'u32[]', space=smem, size = 0x4, offset = 0x4, fixed_abs, tag = 'smem constant byte address 0x4 - core index']
  #allocation1 [shape = 'u32[144,128]{1,0:T(1,128)}', space=vmem, size = 0x12000, scoped, tag = 'internal scratch']
  %s0 = inlined_call_operand.vmem [shape: f32[16,64], index: 0, kind: input, shape index: {}]
  %s1 = inlined_call_operand.hbm [shape: f32[16,64], index: 1, kind: input, shape index: {}]
  %s2 = inlined_call_operand.vmem [shape: f32[16,1], index: 2, kind: input, shape index: {}]
  %s3 = inlined_call_operand.vmem [shape: f32[16,1], index: 3, kind: output, shape index: {}]
  %s4 = sld [smem:[#allocation0]]
  $region26: #{tpu_custom_call.1} parent=0
    _
  %s6 = ssub.s32 1, %s4
  %s7 = scalar_select 0, %s6, %s4
  $region1: #{tpu_custom_call.1} parent=0
    #allocation2 [shape = 'u8[8192]{0}', space=vmem, size = 0x2000, scoped, tag = 'input window, operand 1, single buffered']
    #allocation3 [shape = 's32[1]{0}', space=sflag, size = 0x4, scoped, tag = 'scoped memory for tpu_custom_call.1']
    %8 = vsyncpa [#allocation3], 0
    // Predicated region
    $region2: #{tpu_custom_call.1} parent=1 // pred_check
      _
    $region3: #{tpu_custom_call.1} parent=1 // pred_check_branch
      %10 = sbr.rel (0) target = $region5
    $region4: #{tpu_custom_call.1} parent=1 // pred_region
      _
    $region5: #{tpu_custom_call.1} parent=1 // pred_fallthru
      _
    // Predicated region
    $region6: #{tpu_custom_call.1} parent=1 // pred_check
      _
    $region7: #{tpu_custom_call.1} parent=1 // pred_check_branch
      %12 = sbr.rel (0) target = $region9
    $region8: #{tpu_custom_call.1} parent=1 // pred_region
      %s14 = ssub.s32 256, 256
      %15 = vsyncadd [#allocation3], %s14
      %s16 = sshll.u32 [#allocation2], 4
      %s17 = int_to_ptr.vmem [resolvable:$true] %s16
      %22 = dma.hbm_to_vmem [thread:$0]  %s1, 256, %s17, [#allocation3], 128, 128, 8
    $region9: #{tpu_custom_call.1} parent=1 // pred_fallthru
      _
    // Predicated region
    $region10: #{tpu_custom_call.1} parent=1 // pred_check
      _
    $region11: #{tpu_custom_call.1} parent=1 // pred_check_branch
      %24 = sbr.rel (0) target = $region13
    $region12: #{tpu_custom_call.1} parent=1 // pred_region
      _
    $region13: #{tpu_custom_call.1} parent=1 // pred_fallthru
      _
    // Predicated region
    $region14: #{tpu_custom_call.1} parent=1 // pred_check
      _
    $region15: #{tpu_custom_call.1} parent=1 // pred_check_branch
      %26 = sbr.rel (0) target = $region17
    $region16: #{tpu_custom_call.1} parent=1 // pred_region
      %27 = dma.done [#allocation3], 256
    $region17: #{tpu_custom_call.1} parent=1 // pred_fallthru
      _
    %v28 = vld [vmem:[%s0] sm:$0xff]
    %v29 = vld [vmem:[%s0 + $0x8] sm:$0xff]
    %v30 = vld [vmem:[#allocation2] sm:$0xff]
    %v31 = vld [vmem:[#allocation2 + $0x8] sm:$0xff]
    %v32 = vld [vmem:[%s2] sm:$0xff]
    %v33 = vld [vmem:[%s2 + $0x8] sm:$0xff]
    %v34 = vsub.f32 %v28, %v30
    %v35 = vsub.f32 %v29, %v31
    %v36 = vadd.f32 %v34, 1e-06
    %v37 = vadd.f32 %v35, 1e-06
    %v38 = vmul.f32 %v36, %v36
    %v39 = vmul.f32 %v37, %v37
    %vm40 = vcmask 523264
    %v41 = vsel %vm40, %v38, 0.0
    %42 = vadd.xlane.f32.xlu0 %v41
    %v43 = vpop.xlane.xlu0 %42
    %v44 = vsel %vm40, %v39, 0.0
    %45 = vadd.xlane.f32.xlu0 %v44
    %v46 = vpop.xlane.xlu0 %45
    %v47 = vrsqrt.pop %v43
    %v48 = vmul.f32 %v43, %v47
    %vm49 = vcmp.eq.f32.partialorder %v43, inf
    %v50 = vsel %vm49, %v43, %v48
    %vm51 = vcmp.eq.f32.partialorder %v43, 0.0
    %v52 = vand.u32 %v43, 2147483648
    %v53 = vsel %vm51, %v52, %v50
    %v54 = vrsqrt.pop %v46
    %v55 = vmul.f32 %v46, %v54
    %vm56 = vcmp.eq.f32.partialorder %v46, inf
    %v57 = vsel %vm56, %v46, %v55
    %vm58 = vcmp.eq.f32.partialorder %v46, 0.0
    %v59 = vand.u32 %v46, 2147483648
    %v60 = vsel %vm58, %v59, %v57
    %v61 = vadd.f32 %v53, 1e-09
    %v62 = vadd.f32 %v60, 1e-09
    %v63 = vrsqrt.pop %v61
    %v64 = vmul.f32 %v61, %v63
    %vm65 = vcmp.eq.f32.partialorder %v61, inf
    %v66 = vsel %vm65, %v61, %v64
    %vm67 = vcmp.eq.f32.partialorder %v61, 0.0
    %v68 = vand.u32 %v61, 2147483648
    %v69 = vsel %vm67, %v68, %v66
    %v70 = vrsqrt.pop %v62
    %v71 = vmul.f32 %v62, %v70
    %vm72 = vcmp.eq.f32.partialorder %v62, inf
    %v73 = vsel %vm72, %v62, %v71
    %vm74 = vcmp.eq.f32.partialorder %v62, 0.0
    %v75 = vand.u32 %v62, 2147483648
    %v76 = vsel %vm74, %v75, %v73
    %v77 = vsub.f32 2.0, %v69
    %v78 = vsub.f32 2.0, %v76
    %v79 = vmax.f32 %v77, 0.0
    %v80 = vmax.f32 %v78, 0.0
    %v81 = vmul.f32 %v32, %v53
    %v82 = vmul.f32 %v33, %v60
    %v83 = vsub.f32 1.0, %v32
    %v84 = vsub.f32 1.0, %v33
    %v85 = vmul.f32 %v83, %v79
    %v86 = vmul.f32 %v84, %v80
    %v87 = vmul.f32 %v85, %v79
    %v88 = vmul.f32 %v86, %v80
    %v89 = vadd.f32 %v81, %v87
    %v90 = vadd.f32 %v82, %v88
    %v91 = vmul.f32 %v89, 0.5
    %v92 = vmul.f32 %v90, 0.5
    %vm93 = vcmask 7168
    %94 = vst.msk [vmem:[%s3] sm:$0xff] %vm93, %v91
    %95 = vst.msk [vmem:[%s3 + $0x8] sm:$0xff] %vm93, %v92
    // Predicated region
    $region18: #{tpu_custom_call.1} parent=1 // pred_check
      _
    $region19: #{tpu_custom_call.1} parent=1 // pred_check_branch
      %97 = sbr.rel (0) target = $region21
    $region20: #{tpu_custom_call.1} parent=1 // pred_region
      _
    $region21: #{tpu_custom_call.1} parent=1 // pred_fallthru
      _
    // Predicated region
    $region22: #{tpu_custom_call.1} parent=1 // pred_check
      _
    $region23: #{tpu_custom_call.1} parent=1 // pred_check_branch
      %99 = sbr.rel (0) target = $region25
    $region24: #{tpu_custom_call.1} parent=1 // pred_region
      _
    $region25: #{tpu_custom_call.1} parent=1 // pred_fallthru
      _
    %100 = vsyncpa [#allocation3], 1

</llo_original>
